<compile_context>
chip_gen: v7x
topology: tpu7x:2x2x1
jax: 0.10.0
libtpu: 0.0.40
codegen_flags: <defaults>
</compile_context>

<pallas_src>
import jax
import jax.numpy as jnp
import numpy as np
from jax.experimental import pallas as pl
from jax.experimental.pallas import tpu as pltpu


_TARGET_BLOCK_BYTES = 6 * 1024 * 1024   # ~6 MiB per x / out block
_VMEM_LIMIT_BYTES = 30 * 1024 * 1024    # < v7x 32 MiB scoped default / 64 MiB physical


def _locked_dropout_kernel(mask_ref, x_ref, o_ref):
    # mask block broadcasts over the row (sequence) axis of the x block: the
    # "locked" part of LockedDropout. Multiply stays in the input dtype.
    o_ref[...] = x_ref[...] * mask_ref[...]


def _ceil_to(x, m):
    return -(-x // m) * m


def _sublane_packing(dtype):
    # Rows per fully-packed sublane group: 8 for 32-bit, 16 for bf16, 32 for int8/fp8.
    bits = jnp.dtype(dtype).itemsize * 8
    return max(8, (8 * 32) // bits)


def _choose_col_tile(bh, itemsize, packing, target_bytes):
    """Column tile (multiple of 128, or full BH) so `packing` rows fit the budget."""
    if packing * bh * itemsize <= target_bytes:
        return int(bh)
    tc = (target_bytes // (packing * itemsize) // 128) * 128
    return int(max(128, min(tc, bh)))


def _choose_row_tile(s, row_bytes, packing, target_bytes):
    """Row tile (multiple of `packing`, or S) under the byte budget, preferring
    >=2 (even) grid steps so both v7x TensorCores get work."""
    budget_rows = max(packing, (target_bytes // max(1, row_bytes) // packing) * packing)
    if budget_rows >= s:
        if s > packing:                               # split once for megacore
            half = _ceil_to(-(-s // 2), packing)
            return int(half if half < s else s)
        return int(s)
    ts = budget_rows
    nsteps = -(-s // ts)
    if nsteps % 2 == 1:                               # prefer an even step count
        ts = max(packing, min(ts, _ceil_to(-(-s // (nsteps + 1)), packing)))
    return int(ts)


def _locked_mask(key, keep, shape, dtype):
    # Bernoulli(keep)/keep per (batch, hidden) position, shared across sequence.
    return (jax.random.bernoulli(key, p=keep, shape=shape).astype(jnp.float32) / keep).astype(dtype)


def locked_dropout(x, dropout=None, *, key=None, donate=False):
    """Pallas equivalent of LockedDropout.forward(x, dropout); x is (S, B, H)."""
    if not dropout:                      # matches `if not dropout: return x`
        return x
    if key is None:
        # NOTE: deterministic mask; thread a fresh key per training step in real use.
        key = jax.random.PRNGKey(0)

    S, B, H = x.shape
    BH = B * H
    keep = 1.0 - float(dropout)
    itemsize = jnp.dtype(x.dtype).itemsize
    packing = _sublane_packing(x.dtype)

    cost = pl.CostEstimate(
        flops=S * BH,
        transcendentals=0,
        bytes_accessed=2 * S * BH * itemsize + BH * itemsize,
    )

    if BH % 128 == 0:
        # Lane-dense 2-D layout: (S, B*H); tile rows (sublanes) and columns (lanes).
        mask = _locked_mask(key, keep, (1, BH), x.dtype)
        x2 = x.reshape(S, BH)
        tc = _choose_col_tile(BH, itemsize, packing, _TARGET_BLOCK_BYTES)
        ts = _choose_row_tile(S, tc * itemsize, packing, _TARGET_BLOCK_BYTES)
        grid = (pl.cdiv(S, ts), pl.cdiv(BH, tc))

        out2 = pl.pallas_call(
            _locked_dropout_kernel,
            out_shape=jax.ShapeDtypeStruct((S, BH), x.dtype),
            grid=grid,
            in_specs=[
                pl.BlockSpec((1, tc), lambda i, j: (0, j)),    # mask: locked over rows
                pl.BlockSpec((ts, tc), lambda i, j: (i, j)),   # x: stream tiles
            ],
            out_specs=pl.BlockSpec((ts, tc), lambda i, j: (i, j)),
            compiler_params=pltpu.CompilerParams(
                dimension_semantics=("parallel", "parallel"),
                vmem_limit_bytes=_VMEM_LIMIT_BYTES,
            ),
            cost_estimate=cost,
            input_output_aliases=({1: 0} if donate else {}),
        )(mask, x2)
        return out2.reshape(S, B, H)

    # Fallback for non-lane-dense B*H: keep the (S, B, H) layout; the block's
    # trailing dims equal the full (B, H) extents (always legal); tile rows only.
    # TODO(synk): a fully lane-dense remap for arbitrary H would need a per-B
    # mask gather; left as the simpler 3-D broadcast fallback here.
    mask = _locked_mask(key, keep, (1, B, H), x.dtype)
    ts = _choose_row_tile(S, BH * itemsize, packing, _TARGET_BLOCK_BYTES)
    grid = (pl.cdiv(S, ts),)
    return pl.pallas_call(
        _locked_dropout_kernel,
        out_shape=jax.ShapeDtypeStruct((S, B, H), x.dtype),
        grid=grid,
        in_specs=[
            pl.BlockSpec((1, B, H), lambda i: (0, 0, 0)),
            pl.BlockSpec((ts, B, H), lambda i: (i, 0, 0)),
        ],
        out_specs=pl.BlockSpec((ts, B, H), lambda i: (i, 0, 0)),
        compiler_params=pltpu.CompilerParams(
            dimension_semantics=("parallel",),
            vmem_limit_bytes=_VMEM_LIMIT_BYTES,
        ),
        cost_estimate=cost,
        input_output_aliases=({1: 0} if donate else {}),
    )(mask, x)


if __name__ == "__main__":
    key = jax.random.PRNGKey(0)
    kx, kmask, kx2, kmask2 = jax.random.split(key, 4)

    # Case 1: f32, lane-dense (B*H = 512), single-block grid.
    S, B, H = 8, 4, 128
    x = jax.random.normal(kx, (S, B, H), dtype=jnp.float32)
    p = 0.3
    out = jax.block_until_ready(locked_dropout(x, dropout=p, key=kmask))
    assert out.shape == x.shape and out.dtype == x.dtype

    keep = 1.0 - p
    ref_mask = np.asarray(_locked_mask(kmask, keep, (1, B * H), x.dtype)).reshape(1, B, H)
    ref = np.asarray(x) * ref_mask                    # mask broadcast ("locked") over S
    assert np.allclose(np.asarray(out), ref, atol=1e-6)

    # dropout in {None, 0.0} passthrough
    assert np.array_equal(np.asarray(locked_dropout(x, None)), np.asarray(x))
    assert np.array_equal(np.asarray(locked_dropout(x, 0.0)), np.asarray(x))

    # Case 2: bf16 with a >=2-step row grid (exercises sublane packing of 16
    # and the megacore-friendly row split).
    S2, B2, H2 = 64, 2, 256
    x2 = jax.random.normal(kx2, (S2, B2, H2), dtype=jnp.bfloat16)
    p2 = 0.25
    out2 = jax.block_until_ready(locked_dropout(x2, dropout=p2, key=kmask2))
    assert out2.shape == x2.shape and out2.dtype == x2.dtype
    ref_mask2 = np.asarray(
        _locked_mask(kmask2, 1.0 - p2, (1, B2 * H2), x2.dtype)
    ).reshape(1, B2, H2).astype(np.float32)
    ref2 = np.asarray(x2).astype(np.float32) * ref_mask2
    got2 = np.asarray(out2).astype(np.float32)
    assert np.allclose(got2, ref2, atol=2e-2, rtol=2e-2)

    print("KERNEL_OK")
</pallas_src>

<mosaic_0001>
module attributes {stable_mosaic.version = 11 : i64} {
  func.func @_locked_dropout_kernel(%arg0: i32, %arg1: i32, %arg2: memref<1x512xf32, #tpu.memory_space<vmem>>, %arg3: memref<8x512xf32, #tpu.memory_space<vmem>>, %arg4: memref<8x512xf32, #tpu.memory_space<vmem>>) attributes {dimension_semantics = [#tpu.dimension_semantics<parallel>, #tpu.dimension_semantics<parallel>], iteration_bounds = array<i64: 1, 1>, scalar_prefetch = 0 : i64, scratch_operands = 0 : i64, tpu.core_type = #tpu.core_type<tc>, window_params = [{transform_indices = @transform_0, window_bounds = array<i64: 1, 512>}, {transform_indices = @transform_1, window_bounds = array<i64: 8, 512>}, {transform_indices = @transform_2, window_bounds = array<i64: 8, 512>}]} {
    %c0 = arith.constant 0 : index
    %c0_0 = arith.constant 0 : index
    %0 = vector.load %arg3[%c0, %c0_0] : memref<8x512xf32, #tpu.memory_space<vmem>>, vector<8x512xf32>
    %c0_1 = arith.constant 0 : index
    %c0_2 = arith.constant 0 : index
    %1 = vector.load %arg2[%c0_1, %c0_2] : memref<1x512xf32, #tpu.memory_space<vmem>>, vector<1x512xf32>
    %2 = vector.broadcast %1 : vector<1x512xf32> to vector<8x512xf32>
    %3 = arith.mulf %0, %2 : vector<8x512xf32>
    %c0_3 = arith.constant 0 : index
    %c0_4 = arith.constant 0 : index
    %4 = vector.load %arg4[%c0_3, %c0_4] : memref<8x512xf32, #tpu.memory_space<vmem>>, vector<8x512xf32>
    tpu.vector_store %arg4[%c0_3, %c0_4], %3 {strides = array<i32>} : memref<8x512xf32, #tpu.memory_space<vmem>>, vector<8x512xf32>,
    return
  }
  func.func @transform_0(%arg0: i32, %arg1: i32) -> (i32, i32) {
    %c0_i32 = arith.constant 0 : i32
    %c0_i32_0 = arith.constant 0 : i32
    return %c0_i32, %arg1 : i32, i32
  }
  func.func @transform_1(%arg0: i32, %arg1: i32) -> (i32, i32) {
    %c0_i32 = arith.constant 0 : i32
    return %arg0, %arg1 : i32, i32
  }
  func.func @transform_2(%arg0: i32, %arg1: i32) -> (i32, i32) {
    %c0_i32 = arith.constant 0 : i32
    return %arg0, %arg1 : i32, i32
  }
}

</mosaic_0001>

<llo_original>
// kernel: tpu_custom_call.1
$region0: #{tpu_custom_call.1}
  #allocation0 [shape = 'u32[]', space=smem, size = 0x4, offset = 0x4, fixed_abs, tag = 'smem constant byte address 0x4 - core index']
  #allocation1 [shape = 'u32[144,128]{1,0:T(1,128)}', space=vmem, size = 0x12000, scoped, tag = 'internal scratch']
  %s0 = inlined_call_operand.hbm [shape: f32[1,512], index: 0, kind: input, shape index: {}]
  %s1 = inlined_call_operand.hbm [shape: f32[8,512], index: 1, kind: input, shape index: {}]
  %s2 = inlined_call_operand.hbm [shape: f32[8,512], index: 2, kind: output, shape index: {}]
  %s3 = sld [smem:[#allocation0]]
  $region26: #{tpu_custom_call.1} parent=0
    _
  %s5 = ssub.s32 1, %s3
  %s6 = scalar_select 0, %s5, %s3
  $region1: #{tpu_custom_call.1} parent=0
    #allocation2 [shape = 'u8[2048]{0}', space=vmem, size = 0x800, scoped, tag = 'input window, operand 0, single buffered']
    #allocation3 [shape = 's32[1]{0}', space=sflag, size = 0x4, scoped, tag = 'scoped memory for tpu_custom_call.1']
    #allocation4 [shape = 's32[1]{0}', space=sflag, size = 0x4, scoped, tag = 'scoped memory for tpu_custom_call.1']
    #allocation5 [shape = 'u8[16384]{0}', space=vmem, size = 0x4000, scoped, tag = 'input window, operand 1, single buffered']
    #allocation6 [shape = 's32[1]{0}', space=sflag, size = 0x4, scoped, tag = 'scoped memory for tpu_custom_call.1']
    #allocation7 [shape = 'u8[16384]{0}', space=vmem, size = 0x4000, scoped, tag = 'output window, operand 0, single buffered']
    %7 = vsyncpa [#allocation3], 0
    %8 = vsyncpa [#allocation6], 0
    %9 = vsyncpa [#allocation4], 0
    // Predicated region
    $region2: #{tpu_custom_call.1} parent=1 // pred_check
      _
    $region3: #{tpu_custom_call.1} parent=1 // pred_check_branch
      %11 = sbr.rel (0) target = $region5
    $region4: #{tpu_custom_call.1} parent=1 // pred_region
      %s13 = ssub.s32 64, 64
      %14 = vsyncadd [#allocation3], %s13
      %s16 = sshll.u32 [#allocation2], 4
      %s17 = int_to_ptr.vmem [resolvable:$true] %s16
      %19 = dma.hbm_to_vmem [thread:$0]  %s0, 64, %s17, [#allocation3]
    $region5: #{tpu_custom_call.1} parent=1 // pred_fallthru
      _
    // Predicated region
    $region6: #{tpu_custom_call.1} parent=1 // pred_check
      _
    $region7: #{tpu_custom_call.1} parent=1 // pred_check_branch
      %21 = sbr.rel (0) target = $region9
    $region8: #{tpu_custom_call.1} parent=1 // pred_region
      %s23 = ssub.s32 512, 512
      %24 = vsyncadd [#allocation6], %s23
      %s26 = sshll.u32 [#allocation5], 4
      %s27 = int_to_ptr.vmem [resolvable:$true] %s26
      %29 = dma.hbm_to_vmem [thread:$0]  %s1, 512, %s27, [#allocation6]
    $region9: #{tpu_custom_call.1} parent=1 // pred_fallthru
      _
    // Predicated region
    $region10: #{tpu_custom_call.1} parent=1 // pred_check
      _
    $region11: #{tpu_custom_call.1} parent=1 // pred_check_branch
      %31 = sbr.rel (0) target = $region13
    $region12: #{tpu_custom_call.1} parent=1 // pred_region
      %32 = dma.done [#allocation3], 64
    $region13: #{tpu_custom_call.1} parent=1 // pred_fallthru
      _
    // Predicated region
    $region14: #{tpu_custom_call.1} parent=1 // pred_check
      _
    $region15: #{tpu_custom_call.1} parent=1 // pred_check_branch
      %34 = sbr.rel (0) target = $region17
    $region16: #{tpu_custom_call.1} parent=1 // pred_region
      %35 = dma.done [#allocation6], 512
    $region17: #{tpu_custom_call.1} parent=1 // pred_fallthru
      _
    %v36 = vld [vmem:[#allocation5] sm:$0xff]
    %v37 = vld [vmem:[#allocation5 + $0x8] sm:$0xff]
    %v38 = vld [vmem:[#allocation5 + $0x10] sm:$0xff]
    %v39 = vld [vmem:[#allocation5 + $0x18] sm:$0xff]
    %v40 = vld [vmem:[#allocation2] sm:$0xf]
    %v42 = vlaneseq
    %v43 = vshrl.u32 %v42, 7
    %v44 = vsub.s32 0, %v43
    %v45 = vrot.slane %v40, %v44
    %v46 = vlaneseq
    %v47 = vshrl.u32 %v46, 7
    %v48 = vsub.s32 1, %v47
    %v49 = vrot.slane %v40, %v48
    %v50 = vlaneseq
    %v51 = vshrl.u32 %v50, 7
    %v52 = vsub.s32 2, %v51
    %v53 = vrot.slane %v40, %v52
    %v54 = vlaneseq
    %v55 = vshrl.u32 %v54, 7
    %v56 = vsub.s32 3, %v55
    %v57 = vrot.slane %v40, %v56
    %v62 = vmul.f32 %v36, %v45
    %v63 = vmul.f32 %v37, %v49
    %v64 = vmul.f32 %v38, %v53
    %v65 = vmul.f32 %v39, %v57
    %66 = vst [vmem:[#allocation7] sm:$0xff] %v62
    %67 = vst [vmem:[#allocation7 + $0x8] sm:$0xff] %v63
    %68 = vst [vmem:[#allocation7 + $0x10] sm:$0xff] %v64
    %69 = vst [vmem:[#allocation7 + $0x18] sm:$0xff] %v65
    // Predicated region
    $region18: #{tpu_custom_call.1} parent=1 // pred_check
      _
    $region19: #{tpu_custom_call.1} parent=1 // pred_check_branch
      %71 = sbr.rel (0) target = $region21
    $region20: #{tpu_custom_call.1} parent=1 // pred_region
      %s73 = ssub.s32 512, 512
      %74 = vsyncadd [#allocation4], %s73
      %s76 = sshll.u32 [#allocation7], 4
      %s77 = int_to_ptr.vmem [resolvable:$true] %s76
      %79 = dma.vmem_to_hbm [thread:$0]  %s77, 512, %s2, [#allocation4]
    $region21: #{tpu_custom_call.1} parent=1 // pred_fallthru
      _
    // Predicated region
    $region22: #{tpu_custom_call.1} parent=1 // pred_check
      _
    $region23: #{tpu_custom_call.1} parent=1 // pred_check_branch
      %81 = sbr.rel (0) target = $region25
    $region24: #{tpu_custom_call.1} parent=1 // pred_region
      %82 = dma.done [#allocation4], 512
    $region25: #{tpu_custom_call.1} parent=1 // pred_fallthru
      _
    %83 = vsyncpa [#allocation3], 1
    %84 = vsyncpa [#allocation6], 1
    %85 = vsyncpa [#allocation4], 1

</llo_original>
